<compile_context>
chip_gen: v6e
topology: v6e:2x2x1
jax: 0.10.0
libtpu: 0.0.40
codegen_flags: <defaults>
</compile_context>

<pallas_src>
import functools

import jax
import jax.numpy as jnp
from jax.experimental import pallas as pl
from jax.experimental.pallas import tpu as pltpu

EPS = 1e-5  # nn.BatchNorm1d default


def _round_up(x, m):
    return ((x + m - 1) // m) * m


def forecast_cch_kernel(x_ref, w1_ref, b1_ref, w2_ref, b2_ref, w3_ref, b3_ref,
                        o_ref):
    x = x_ref[...]                                                    # (TN, IN)
    # fc1 (BN2 folded) + relu1   (dropout1 = identity in eval)
    h = jnp.dot(x, w1_ref[...], preferred_element_type=jnp.float32) + b1_ref[...]
    h = jnp.maximum(h, 0.0)
    # fc2 (BN3 folded) + relu2   (dropout2 = identity in eval)
    h = jnp.dot(h, w2_ref[...], preferred_element_type=jnp.float32) + b2_ref[...]
    h = jnp.maximum(h, 0.0)
    # fc3
    o_ref[...] = (jnp.dot(h, w3_ref[...], preferred_element_type=jnp.float32)
                  + b3_ref[...])


def _fold_and_pad_params(params):
    """Fold eval-mode BN into the Linear layers, then zero-pad to lane-aligned
    sizes.  Returns (w1,b1,w2,b2,w3,b3) with hidden dims padded to 128 and the
    output dim padded to a multiple of 128."""
    f32 = jnp.float32

    # --- fold BN2 into fc1, BN3 into fc2 (affine maps in eval mode) ---------
    s2 = params["g2"] * jax.lax.rsqrt(params["v2"] + EPS)             # (1, h1)
    w1 = params["w1"] * s2                                            # (in, h1)
    b1 = (params["b1"] - params["m2"]) * s2 + params["be2"]           # (1, h1)

    s3 = params["g3"] * jax.lax.rsqrt(params["v3"] + EPS)             # (1, h2)
    w2 = params["w2"] * s3                                            # (h1, h2)
    b2 = (params["b2"] - params["m3"]) * s3 + params["be3"]           # (1, h2)

    w3, b3 = params["w3"], params["b3"]                               # (h2, out)

    in_size, h1 = w1.shape
    _, h2 = w2.shape
    _, out = w3.shape
    h1p = _round_up(h1, 128)
    h2p = _round_up(h2, 128)
    outp = _round_up(out, 128)

    # --- zero-pad (mathematically inert: pad cols/rows contribute 0) --------
    w1 = jnp.pad(w1.astype(f32), ((0, 0), (0, h1p - h1)))
    b1 = jnp.pad(b1.astype(f32), ((0, 0), (0, h1p - h1)))
    w2 = jnp.pad(w2.astype(f32), ((0, h1p - h1), (0, h2p - h2)))
    b2 = jnp.pad(b2.astype(f32), ((0, 0), (0, h2p - h2)))
    w3 = jnp.pad(w3.astype(f32), ((0, h2p - h2), (0, outp - out)))
    b3 = jnp.pad(b3.astype(f32), ((0, 0), (0, outp - out)))
    return (w1, b1, w2, b2, w3, b3), (in_size, h1p, h2p, outp, out)


@functools.partial(jax.jit, static_argnames=("tile_n",))
def forecast_cch_forward(x, params, *, tile_n=512):
    """x: (N, input_size) float32 -> (N, 99, 6) float32 (eval-mode forward)."""
    (w1, b1, w2, b2, w3, b3), (in_size, h1p, h2p, outp, out_size) = \
        _fold_and_pad_params(params)

    n = x.shape[0]
    tn = min(tile_n, _round_up(n, 8))          # tile rows, multiple of 8
    n_pad = _round_up(n, tn)                   # pad batch to a whole grid
    if n_pad != n:
        x = jnp.pad(x, ((0, n_pad - n), (0, 0)))
    grid = (n_pad // tn,)

    cost = pl.CostEstimate(
        flops=2 * n_pad * (in_size * h1p + h1p * h2p + h2p * outp),
        transcendentals=0,
        bytes_accessed=n_pad * (in_size + outp) * 4
        + 4 * (w1.size + b1.size + w2.size + b2.size + w3.size + b3.size),
    )

    out_flat = pl.pallas_call(
        forecast_cch_kernel,
        out_shape=jax.ShapeDtypeStruct((n_pad, outp), jnp.float32),
        grid=grid,
        in_specs=[
            pl.BlockSpec((tn, in_size), lambda i: (i, 0)),       # x  (tiled)
            pl.BlockSpec((in_size, h1p), lambda i: (0, 0)),      # w1 (resident)
            pl.BlockSpec((1, h1p), lambda i: (0, 0)),            # b1
            pl.BlockSpec((h1p, h2p), lambda i: (0, 0)),          # w2
            pl.BlockSpec((1, h2p), lambda i: (0, 0)),            # b2
            pl.BlockSpec((h2p, outp), lambda i: (0, 0)),         # w3
            pl.BlockSpec((1, outp), lambda i: (0, 0)),           # b3
        ],
        out_specs=pl.BlockSpec((tn, outp), lambda i: (i, 0)),
        compiler_params=pltpu.CompilerParams(
            dimension_semantics=("parallel",)),
        cost_estimate=cost,
    )(x, w1, b1, w2, b2, w3, b3)

    # Drop batch/output padding, then the view(-1, 99, 6) glue.
    return out_flat[:n, :out_size].reshape(-1, 99, 6)


def init_params(key, input_size=10, h1=100, h2=100, output_size=99 * 6):
    """Deterministic synthetic parameters matching ForecastCCH.__init__ shapes.

    Linear weights are generated in PyTorch (out, in) layout and transposed to
    (in, out).  BatchNorm params are (1, C) rows."""
    ks = jax.random.split(key, 12)
    f32 = jnp.float32

    def lin(kw, kb, fan_in, fan_out):
        bound = 1.0 / jnp.sqrt(f32(fan_in))
        w = jax.random.uniform(kw, (fan_out, fan_in), f32, -bound, bound)
        b = jax.random.uniform(kb, (1, fan_out), f32, -bound, bound)
        return w.T, b  # (in, out), (1, out)

    w1, b1 = lin(ks[0], ks[1], input_size, h1)
    w2, b2 = lin(ks[2], ks[3], h1, h2)
    w3, b3 = lin(ks[4], ks[5], h2, output_size)

    def bn(kg, kb, kv, c):
        g = 1.0 + 0.1 * jax.random.normal(kg, (1, c), f32)
        be = 0.1 * jax.random.normal(kb, (1, c), f32)
        m = 0.05 * jax.random.normal(kv, (1, c), f32)
        v = jnp.abs(0.5 + 0.1 * jax.random.normal(kv, (1, c), f32))
        return g, be, m, v

    g2, be2, m2, v2 = bn(ks[6], ks[7], ks[8], h1)
    g3, be3, m3, v3 = bn(ks[9], ks[10], ks[11], h2)

    return {
        "w1": w1, "b1": b1,
        "g2": g2, "be2": be2, "m2": m2, "v2": v2,
        "w2": w2, "b2": b2,
        "g3": g3, "be3": be3, "m3": m3, "v3": v3,
        "w3": w3, "b3": b3,
    }


def reference_forward(x, p):
    """Pure-JAX reference mirroring the PyTorch eval-mode forward."""
    h = x @ p["w1"] + p["b1"]
    h = (h - p["m2"]) / jnp.sqrt(p["v2"] + EPS) * p["g2"] + p["be2"]
    h = jnp.maximum(h, 0.0)
    h = h @ p["w2"] + p["b2"]
    h = (h - p["m3"]) / jnp.sqrt(p["v3"] + EPS) * p["g3"] + p["be3"]
    h = jnp.maximum(h, 0.0)
    h = h @ p["w3"] + p["b3"]
    return h.reshape(-1, 99, 6)


if __name__ == "__main__":
    key = jax.random.PRNGKey(0)
    k_x, k_p = jax.random.split(key)

    input_size, h1, h2 = 10, 100, 100
    output_size = 99 * 6  # view(-1, 99, 6) implies 594 features per sample
    batch = 16

    x = jax.random.normal(k_x, (batch, input_size), jnp.float32)
    params = init_params(k_p, input_size, h1, h2, output_size)

    out = forecast_cch_forward(x, params)
    out = jax.block_until_ready(out)

    ref = reference_forward(x, params)
    assert out.shape == (batch, 99, 6), out.shape
    assert jnp.allclose(out, ref, atol=1e-4, rtol=1e-4), float(
        jnp.max(jnp.abs(out - ref)))

    print("KERNEL_OK")
</pallas_src>

<mosaic_0001>
module attributes {stable_mosaic.version = 11 : i64} {
  func.func @forecast_cch_kernel(%arg0: i32, %arg1: memref<16x10xf32, #tpu.memory_space<vmem>>, %arg2: memref<10x128xf32, #tpu.memory_space<vmem>>, %arg3: memref<1x128xf32, #tpu.memory_space<vmem>>, %arg4: memref<128x128xf32, #tpu.memory_space<vmem>>, %arg5: memref<1x128xf32, #tpu.memory_space<vmem>>, %arg6: memref<128x640xf32, #tpu.memory_space<vmem>>, %arg7: memref<1x640xf32, #tpu.memory_space<vmem>>, %arg8: memref<16x640xf32, #tpu.memory_space<vmem>>) attributes {dimension_semantics = [#tpu.dimension_semantics<parallel>], iteration_bounds = array<i64: 1>, scalar_prefetch = 0 : i64, scratch_operands = 0 : i64, tpu.core_type = #tpu.core_type<tc>, window_params = [{transform_indices = @transform_0, window_bounds = array<i64: 16, 10>}, {pipeline_mode = #tpu.pipeline_mode<synchronous>, transform_indices = @transform_1, window_bounds = array<i64: 10, 128>}, {pipeline_mode = #tpu.pipeline_mode<synchronous>, transform_indices = @transform_2, window_bounds = array<i64: 1, 128>}, {pipeline_mode = #tpu.pipeline_mode<synchronous>, transform_indices = @transform_3, window_bounds = array<i64: 128, 128>}, {pipeline_mode = #tpu.pipeline_mode<synchronous>, transform_indices = @transform_4, window_bounds = array<i64: 1, 128>}, {pipeline_mode = #tpu.pipeline_mode<synchronous>, transform_indices = @transform_5, window_bounds = array<i64: 128, 640>}, {pipeline_mode = #tpu.pipeline_mode<synchronous>, transform_indices = @transform_6, window_bounds = array<i64: 1, 640>}, {transform_indices = @transform_7, window_bounds = array<i64: 16, 640>}]} {
    %c0 = arith.constant 0 : index
    %c0_0 = arith.constant 0 : index
    %0 = vector.load %arg1[%c0, %c0_0] : memref<16x10xf32, #tpu.memory_space<vmem>>, vector<16x10xf32>
    %c0_1 = arith.constant 0 : index
    %c0_2 = arith.constant 0 : index
    %1 = vector.load %arg2[%c0_1, %c0_2] : memref<10x128xf32, #tpu.memory_space<vmem>>, vector<10x128xf32>
    %cst = arith.constant dense<0.000000e+00> : vector<16x128xf32>
    %2 = tpu.matmul %0, %1, %cst {dimension_numbers = #tpu.dot_dimension_numbers<[1], [0], [0], [1], [0, 0, 1, 1], [], []>} : vector<16x10xf32>, vector<10x128xf32>, vector<16x128xf32> -> vector<16x128xf32>
    %c0_3 = arith.constant 0 : index
    %c0_4 = arith.constant 0 : index
    %3 = vector.load %arg3[%c0_3, %c0_4] : memref<1x128xf32, #tpu.memory_space<vmem>>, vector<1x128xf32>
    %4 = vector.broadcast %3 : vector<1x128xf32> to vector<16x128xf32>
    %5 = arith.addf %2, %4 : vector<16x128xf32>
    %cst_5 = arith.constant 0.000000e+00 : f32
    %6 = vector.broadcast %cst_5 : f32 to vector<16x128xf32>
    %7 = arith.maximumf %5, %6 : vector<16x128xf32>
    %c0_6 = arith.constant 0 : index
    %c0_7 = arith.constant 0 : index
    %8 = vector.load %arg4[%c0_6, %c0_7] : memref<128x128xf32, #tpu.memory_space<vmem>>, vector<128x128xf32>
    %cst_8 = arith.constant dense<0.000000e+00> : vector<16x128xf32>
    %9 = tpu.matmul %7, %8, %cst_8 {dimension_numbers = #tpu.dot_dimension_numbers<[1], [0], [0], [1], [0, 0, 1, 1], [], []>} : vector<16x128xf32>, vector<128x128xf32>, vector<16x128xf32> -> vector<16x128xf32>
    %c0_9 = arith.constant 0 : index
    %c0_10 = arith.constant 0 : index
    %10 = vector.load %arg5[%c0_9, %c0_10] : memref<1x128xf32, #tpu.memory_space<vmem>>, vector<1x128xf32>
    %11 = vector.broadcast %10 : vector<1x128xf32> to vector<16x128xf32>
    %12 = arith.addf %9, %11 : vector<16x128xf32>
    %cst_11 = arith.constant 0.000000e+00 : f32
    %13 = vector.broadcast %cst_11 : f32 to vector<16x128xf32>
    %14 = arith.maximumf %12, %13 : vector<16x128xf32>
    %c0_12 = arith.constant 0 : index
    %c0_13 = arith.constant 0 : index
    %15 = vector.load %arg6[%c0_12, %c0_13] : memref<128x640xf32, #tpu.memory_space<vmem>>, vector<128x640xf32>
    %cst_14 = arith.constant dense<0.000000e+00> : vector<16x640xf32>
    %16 = tpu.matmul %14, %15, %cst_14 {dimension_numbers = #tpu.dot_dimension_numbers<[1], [0], [0], [1], [0, 0, 1, 1], [], []>} : vector<16x128xf32>, vector<128x640xf32>, vector<16x640xf32> -> vector<16x640xf32>
    %c0_15 = arith.constant 0 : index
    %c0_16 = arith.constant 0 : index
    %17 = vector.load %arg7[%c0_15, %c0_16] : memref<1x640xf32, #tpu.memory_space<vmem>>, vector<1x640xf32>
    %18 = vector.broadcast %17 : vector<1x640xf32> to vector<16x640xf32>
    %19 = arith.addf %16, %18 : vector<16x640xf32>
    %c0_17 = arith.constant 0 : index
    %c0_18 = arith.constant 0 : index
    %20 = vector.load %arg8[%c0_17, %c0_18] : memref<16x640xf32, #tpu.memory_space<vmem>>, vector<16x640xf32>
    tpu.vector_store %arg8[%c0_17, %c0_18], %19 {strides = array<i32>} : memref<16x640xf32, #tpu.memory_space<vmem>>, vector<16x640xf32>,
    return
  }
  func.func @transform_0(%arg0: i32) -> (i32, i32) {
    %c0_i32 = arith.constant 0 : i32
    %c0_i32_0 = arith.constant 0 : i32
    return %arg0, %c0_i32 : i32, i32
  }
  func.func @transform_1(%arg0: i32) -> (i32, i32) {
    %c0_i32 = arith.constant 0 : i32
    %c0_i32_0 = arith.constant 0 : i32
    %c0_i32_1 = arith.constant 0 : i32
    return %c0_i32, %c0_i32_0 : i32, i32
  }
  func.func @transform_2(%arg0: i32) -> (i32, i32) {
    %c0_i32 = arith.constant 0 : i32
    %c0_i32_0 = arith.constant 0 : i32
    %c0_i32_1 = arith.constant 0 : i32
    return %c0_i32, %c0_i32_0 : i32, i32
  }
  func.func @transform_3(%arg0: i32) -> (i32, i32) {
    %c0_i32 = arith.constant 0 : i32
    %c0_i32_0 = arith.constant 0 : i32
    %c0_i32_1 = arith.constant 0 : i32
    return %c0_i32, %c0_i32_0 : i32, i32
  }
  func.func @transform_4(%arg0: i32) -> (i32, i32) {
    %c0_i32 = arith.constant 0 : i32
    %c0_i32_0 = arith.constant 0 : i32
    %c0_i32_1 = arith.constant 0 : i32
    return %c0_i32, %c0_i32_0 : i32, i32
  }
  func.func @transform_5(%arg0: i32) -> (i32, i32) {
    %c0_i32 = arith.constant 0 : i32
    %c0_i32_0 = arith.constant 0 : i32
    %c0_i32_1 = arith.constant 0 : i32
    return %c0_i32, %c0_i32_0 : i32, i32
  }
  func.func @transform_6(%arg0: i32) -> (i32, i32) {
    %c0_i32 = arith.constant 0 : i32
    %c0_i32_0 = arith.constant 0 : i32
    %c0_i32_1 = arith.constant 0 : i32
    return %c0_i32, %c0_i32_0 : i32, i32
  }
  func.func @transform_7(%arg0: i32) -> (i32, i32) {
    %c0_i32 = arith.constant 0 : i32
    %c0_i32_0 = arith.constant 0 : i32
    return %arg0, %c0_i32 : i32, i32
  }
}

</mosaic_0001>

<llo_original>
// kernel: forecast_cch_forward.1
$region0: #{forecast_cch_forward.1}
  #allocation0 [shape = 'u32[]', space=smem, size = 0x4, offset = 0x4, fixed_abs, tag = 'smem constant byte address 0x4 - core index']
  #allocation1 [shape = 'u32[144,128]{1,0:T(1,128)}', space=vmem, size = 0x12000, scoped, tag = 'internal scratch']
  %s0 = inlined_call_operand.vmem [shape: f32[16,10], index: 0, kind: input, shape index: {}]
  %s1 = inlined_call_operand.vmem [shape: f32[10,128], index: 1, kind: input, shape index: {}]
  %s2 = inlined_call_operand.vmem [shape: f32[1,128], index: 2, kind: input, shape index: {}]
  %s3 = inlined_call_operand.vmem [shape: f32[128,128], index: 3, kind: input, shape index: {}]
  %s4 = inlined_call_operand.vmem [shape: f32[1,128], index: 4, kind: input, shape index: {}]
  %s5 = inlined_call_operand.vmem [shape: f32[128,640], index: 5, kind: input, shape index: {}]
  %s6 = inlined_call_operand.vmem [shape: f32[1,640], index: 6, kind: input, shape index: {}]
  %s7 = inlined_call_operand.vmem [shape: f32[16,640], index: 7, kind: output, shape index: {}]
  %s8 = sld [smem:[#allocation0]]
  $region38: #{forecast_cch_forward.1} parent=0
    _
  %s10 = ssub.s32 1, %s8
  %s11 = scalar_select 0, %s10, %s8
  // Predicated region
  $region2: #{forecast_cch_forward.1} parent=0 // pred_check
    _
  $region3: #{forecast_cch_forward.1} parent=0 // pred_check_branch
    %13 = sbr.rel (0) target = $region5
  $region4: #{forecast_cch_forward.1} parent=0 // pred_region
    _
  $region5: #{forecast_cch_forward.1} parent=0 // pred_fallthru
    _
  // Predicated region
  $region6: #{forecast_cch_forward.1} parent=0 // pred_check
    _
  $region7: #{forecast_cch_forward.1} parent=0 // pred_check_branch
    %15 = sbr.rel (0) target = $region9
  $region8: #{forecast_cch_forward.1} parent=0 // pred_region
    _
  $region9: #{forecast_cch_forward.1} parent=0 // pred_fallthru
    _
  // Predicated region
  $region10: #{forecast_cch_forward.1} parent=0 // pred_check
    _
  $region11: #{forecast_cch_forward.1} parent=0 // pred_check_branch
    %17 = sbr.rel (0) target = $region13
  $region12: #{forecast_cch_forward.1} parent=0 // pred_region
    _
  $region13: #{forecast_cch_forward.1} parent=0 // pred_fallthru
    _
  // Predicated region
  $region14: #{forecast_cch_forward.1} parent=0 // pred_check
    _
  $region15: #{forecast_cch_forward.1} parent=0 // pred_check_branch
    %19 = sbr.rel (0) target = $region17
  $region16: #{forecast_cch_forward.1} parent=0 // pred_region
    _
  $region17: #{forecast_cch_forward.1} parent=0 // pred_fallthru
    _
  // Predicated region
  $region18: #{forecast_cch_forward.1} parent=0 // pred_check
    _
  $region19: #{forecast_cch_forward.1} parent=0 // pred_check_branch
    %21 = sbr.rel (0) target = $region21
  $region20: #{forecast_cch_forward.1} parent=0 // pred_region
    _
  $region21: #{forecast_cch_forward.1} parent=0 // pred_fallthru
    _
  // Predicated region
  $region22: #{forecast_cch_forward.1} parent=0 // pred_check
    _
  $region23: #{forecast_cch_forward.1} parent=0 // pred_check_branch
    %23 = sbr.rel (0) target = $region25
  $region24: #{forecast_cch_forward.1} parent=0 // pred_region
    _
  $region25: #{forecast_cch_forward.1} parent=0 // pred_fallthru
    _
  // Predicated region
  $region26: #{forecast_cch_forward.1} parent=0 // pred_check
    _
  $region27: #{forecast_cch_forward.1} parent=0 // pred_check_branch
    %25 = sbr.rel (0) target = $region29
  $region28: #{forecast_cch_forward.1} parent=0 // pred_region
    _
  $region29: #{forecast_cch_forward.1} parent=0 // pred_fallthru
    _
  %v26 = vld [vmem:[%s0] sm:$0xff]
  %v27 = vld [vmem:[%s0 + $0x8] sm:$0xff]
  %v28 = vld [vmem:[%s1] sm:$0xff]
  %v29 = vld [vmem:[%s1 + $0x8] sm:$0x3]
  %v30 = vld [vmem:[%s2] sm:$0x1]
  %v32 = vlaneseq
  %v33 = vshrl.u32 %v32, 7
  %v34 = vsub.s32 0, %v33
  %v35 = vrot.slane %v30, %v34
  %vm37 = vcmask 80896
  %v39 = vsel %vm37, %v26, 0
  %v42 = vsel %vm37, %v27, 0
  %vm44 = vcmask 1041408
  %v46 = vsel %vm44, %v29, 0
  %48 = vmatprep.subr.mxu0 0.0
  %49 = vmatpush1.msra.mxu0 0.0
  %50 = vmatprep.subr.mxu0 0.0
  %51 = vmatpush1.msra.mxu0 0.0
  %52 = vmatprep.subr.mxu0 0.0
  %53 = vmatpush1.msra.mxu0 0.0
  %54 = vmatprep.subr.mxu0 0.0
  %55 = vmatpush1.msra.mxu0 0.0
  %56 = vmatprep.subr.mxu0 0.0
  %57 = vmatpush1.msra.mxu0 0.0
  %58 = vmatprep.subr.mxu0 0.0
  %59 = vmatpush1.msra.mxu0 0.0
  %60 = vmatprep.subr.mxu0 0.0
  %61 = vmatpush1.msra.mxu0 0.0
  %62 = vmatprep.subr.mxu0 0.0
  %63 = vmatpush1.msra.mxu0 0.0
  %64 = vmatprep.subr.mxu0 0.0
  %65 = vmatpush1.msra.mxu0 0.0
  %66 = vmatprep.subr.mxu0 0.0
  %67 = vmatpush1.msra.mxu0 0.0
  %68 = vmatprep.subr.mxu0 0.0
  %69 = vmatpush1.msra.mxu0 0.0
  %70 = vmatprep.subr.mxu0 0.0
  %71 = vmatpush1.msra.mxu0 0.0
  %72 = vmatprep.subr.mxu0 0.0
  %73 = vmatpush1.msra.mxu0 0.0
  %74 = vmatprep.subr.mxu0 0.0
  %75 = vmatpush1.msra.mxu0 0.0
  %76 = vmatprep.subr.mxu0 0.0
  %77 = vmatpush1.msra.mxu0 %v46
  %78 = vmatprep.subr.mxu0 0.0
  %79 = vmatpush1.msra.mxu0 %v28
  %80 = vmatprep.subr.mxu0 0.0
  %81 = vmatpush2.msra.mxu0 0.0
  %82 = vmatprep.subr.mxu0 0.0
  %83 = vmatpush2.msra.mxu0 0.0
  %84 = vmatprep.subr.mxu0 0.0
  %85 = vmatpush2.msra.mxu0 0.0
  %86 = vmatprep.subr.mxu0 0.0
  %87 = vmatpush2.msra.mxu0 0.0
  %88 = vmatprep.subr.mxu0 0.0
  %89 = vmatpush2.msra.mxu0 0.0
  %90 = vmatprep.subr.mxu0 0.0
  %91 = vmatpush2.msra.mxu0 0.0
  %92 = vmatprep.subr.mxu0 0.0
  %93 = vmatpush2.msra.mxu0 0.0
  %94 = vmatprep.subr.mxu0 0.0
  %95 = vmatpush2.msra.mxu0 0.0
  %96 = vmatprep.subr.mxu0 0.0
  %97 = vmatpush2.msra.mxu0 0.0
  %98 = vmatprep.subr.mxu0 0.0
  %99 = vmatpush2.msra.mxu0 0.0
  %100 = vmatprep.subr.mxu0 0.0
  %101 = vmatpush2.msra.mxu0 0.0
  %102 = vmatprep.subr.mxu0 0.0
  %103 = vmatpush2.msra.mxu0 0.0
  %104 = vmatprep.subr.mxu0 0.0
  %105 = vmatpush2.msra.mxu0 0.0
  %106 = vmatprep.subr.mxu0 0.0
  %107 = vmatpush2.msra.mxu0 0.0
  %108 = vmatprep.subr.mxu0 0.0
  %109 = vmatpush2.msra.mxu0 0.0
  %110 = vmatprep.subr.mxu0 0.0
  %111 = vmatpush2.msra.mxu0 0.0
  %112 = vmatprep.mubr.f32.mxu0 0.0
  %113 = vmatmul.mubr.f32.gmra.mxu0 %v39
  %v114 = vpop.f32.mrf.mxu0
  %v115 = vadd.f32 %v35, %v114
  %v116 = vpop.f32.mrf.mxu0
  %117 = vmatprep.mubr.f32.mxu0 0.0
  %118 = vmatmul.mubr.f32.gmra.mxu0 %v42
  %v119 = vpop.f32.mrf.mxu0
  %v120 = vadd.f32 %v35, %v119
  %v121 = vpop.f32.mrf.mxu0
  %122 = vdwg.mxu0
  %v123 = vmax.f32 %v115, 0.0
  %v124 = vmax.f32 %v120, 0.0
  %v125 = vld [vmem:[%s3] sm:$0xff]
  %v126 = vld [vmem:[%s3 + $0x8] sm:$0xff]
  %v127 = vld [vmem:[%s3 + $0x10] sm:$0xff]
  %v128 = vld [vmem:[%s3 + $0x18] sm:$0xff]
  %v129 = vld [vmem:[%s3 + $0x20] sm:$0xff]
  %v130 = vld [vmem:[%s3 + $0x28] sm:$0xff]
  %v131 = vld [vmem:[%s3 + $0x30] sm:$0xff]
  %v132 = vld [vmem:[%s3 + $0x38] sm:$0xff]
  %v133 = vld [vmem:[%s3 + $0x40] sm:$0xff]
  %v134 = vld [vmem:[%s3 + $0x48] sm:$0xff]
  %v135 = vld [vmem:[%s3 + $0x50] sm:$0xff]
  %v136 = vld [vmem:[%s3 + $0x58] sm:$0xff]
  %v137 = vld [vmem:[%s3 + $0x60] sm:$0xff]
  %v138 = vld [vmem:[%s3 + $0x68] sm:$0xff]
  %v139 = vld [vmem:[%s3 + $0x70] sm:$0xff]
  %v140 = vld [vmem:[%s3 + $0x78] sm:$0xff]
  %v141 = vld [vmem:[%s4] sm:$0x1]
  %v143 = vlaneseq
  %v144 = vshrl.u32 %v143, 7
  %v145 = vsub.s32 0, %v144
  %v146 = vrot.slane %v141, %v145
  %148 = vmatprep.subr.mxu0 0.0
  %149 = vmatpush1.msra.mxu0 %v140
  %150 = vmatprep.subr.mxu0 0.0
  %151 = vmatpush1.msra.mxu0 %v139
  %152 = vmatprep.subr.mxu0 0.0
  %153 = vmatpush1.msra.mxu0 %v138
  %154 = vmatprep.subr.mxu0 0.0
  %155 = vmatpush1.msra.mxu0 %v137
  %156 = vmatprep.subr.mxu0 0.0
  %157 = vmatpush1.msra.mxu0 %v136
  %158 = vmatprep.subr.mxu0 0.0
  %159 = vmatpush1.msra.mxu0 %v135
  %160 = vmatprep.subr.mxu0 0.0
  %161 = vmatpush1.msra.mxu0 %v134
  %162 = vmatprep.subr.mxu0 0.0
  %163 = vmatpush1.msra.mxu0 %v133
  %164 = vmatprep.subr.mxu0 0.0
  %165 = vmatpush1.msra.mxu0 %v132
  %166 = vmatprep.subr.mxu0 0.0
  %167 = vmatpush1.msra.mxu0 %v131
  %168 = vmatprep.subr.mxu0 0.0
  %169 = vmatpush1.msra.mxu0 %v130
  %170 = vmatprep.subr.mxu0 0.0
  %171 = vmatpush1.msra.mxu0 %v129
  %172 = vmatprep.subr.mxu0 0.0
  %173 = vmatpush1.msra.mxu0 %v128
  %174 = vmatprep.subr.mxu0 0.0
  %175 = vmatpush1.msra.mxu0 %v127
  %176 = vmatprep.subr.mxu0 0.0
  %177 = vmatpush1.msra.mxu0 %v126
  %178 = vmatprep.subr.mxu0 0.0
  %179 = vmatpush1.msra.mxu0 %v125
  %180 = vmatprep.subr.mxu0 0.0
  %181 = vmatpush2.msra.mxu0 0.0
  %182 = vmatprep.subr.mxu0 0.0
  %183 = vmatpush2.msra.mxu0 0.0
  %184 = vmatprep.subr.mxu0 0.0
  %185 = vmatpush2.msra.mxu0 0.0
  %186 = vmatprep.subr.mxu0 0.0
  %187 = vmatpush2.msra.mxu0 0.0
  %188 = vmatprep.subr.mxu0 0.0
  %189 = vmatpush2.msra.mxu0 0.0
  %190 = vmatprep.subr.mxu0 0.0
  %191 = vmatpush2.msra.mxu0 0.0
  %192 = vmatprep.subr.mxu0 0.0
  %193 = vmatpush2.msra.mxu0 0.0
  %194 = vmatprep.subr.mxu0 0.0
  %195 = vmatpush2.msra.mxu0 0.0
  %196 = vmatprep.subr.mxu0 0.0
  %197 = vmatpush2.msra.mxu0 0.0
  %198 = vmatprep.subr.mxu0 0.0
  %199 = vmatpush2.msra.mxu0 0.0
  %200 = vmatprep.subr.mxu0 0.0
  %201 = vmatpush2.msra.mxu0 0.0
  %202 = vmatprep.subr.mxu0 0.0
  %203 = vmatpush2.msra.mxu0 0.0
  %204 = vmatprep.subr.mxu0 0.0
  %205 = vmatpush2.msra.mxu0 0.0
  %206 = vmatprep.subr.mxu0 0.0
  %207 = vmatpush2.msra.mxu0 0.0
  %208 = vmatprep.subr.mxu0 0.0
  %209 = vmatpush2.msra.mxu0 0.0
  %210 = vmatprep.subr.mxu0 0.0
  %211 = vmatpush2.msra.mxu0 0.0
  %212 = vmatprep.mubr.f32.mxu0 0.0
  %213 = vmatmul.mubr.f32.gmra.mxu0 %v123
  %v214 = vpop.f32.mrf.mxu0
  %v215 = vadd.f32 %v146, %v214
  %v216 = vpop.f32.mrf.mxu0
  %217 = vmatprep.mubr.f32.mxu0 0.0
  %218 = vmatmul.mubr.f32.gmra.mxu0 %v124
  %v219 = vpop.f32.mrf.mxu0
  %v220 = vadd.f32 %v146, %v219
  %v221 = vpop.f32.mrf.mxu0
  %222 = vdwg.mxu0
  %v223 = vmax.f32 %v215, 0.0
  %v224 = vmax.f32 %v220, 0.0
  %v225 = vld [vmem:[%s5] sm:$0xff]
  %v226 = vld [vmem:[%s5 + $0x8] sm:$0xff]
  %v227 = vld [vmem:[%s5 + $0x10] sm:$0xff]
  %v228 = vld [vmem:[%s5 + $0x18] sm:$0xff]
  %v229 = vld [vmem:[%s5 + $0x20] sm:$0xff]
  %v230 = vld [vmem:[%s5 + $0x28] sm:$0xff]
  %v231 = vld [vmem:[%s5 + $0x30] sm:$0xff]
  %v232 = vld [vmem:[%s5 + $0x38] sm:$0xff]
  %v233 = vld [vmem:[%s5 + $0x40] sm:$0xff]
  %v234 = vld [vmem:[%s5 + $0x48] sm:$0xff]
  %v235 = vld [vmem:[%s5 + $0x50] sm:$0xff]
  %v236 = vld [vmem:[%s5 + $0x58] sm:$0xff]
  %v237 = vld [vmem:[%s5 + $0x60] sm:$0xff]
  %v238 = vld [vmem:[%s5 + $0x68] sm:$0xff]
  %v239 = vld [vmem:[%s5 + $0x70] sm:$0xff]
  %v240 = vld [vmem:[%s5 + $0x78] sm:$0xff]
  %v241 = vld [vmem:[%s5 + $0x80] sm:$0xff]
  %v242 = vld [vmem:[%s5 + $0x88] sm:$0xff]
  %v243 = vld [vmem:[%s5 + $0x90] sm:$0xff]
  %v244 = vld [vmem:[%s5 + $0x98] sm:$0xff]
  %v245 = vld [vmem:[%s5 + $0xa0] sm:$0xff]
  %v246 = vld [vmem:[%s5 + $0xa8] sm:$0xff]
  %v247 = vld [vmem:[%s5 + $0xb0] sm:$0xff]
  %v248 = vld [vmem:[%s5 + $0xb8] sm:$0xff]
  %v249 = vld [vmem:[%s5 + $0xc0] sm:$0xff]
  %v250 = vld [vmem:[%s5 + $0xc8] sm:$0xff]
  %v251 = vld [vmem:[%s5 + $0xd0] sm:$0xff]
  %v252 = vld [vmem:[%s5 + $0xd8] sm:$0xff]
  %v253 = vld [vmem:[%s5 + $0xe0] sm:$0xff]
  %v254 = vld [vmem:[%s5 + $0xe8] sm:$0xff]
  %v255 = vld [vmem:[%s5 + $0xf0] sm:$0xff]
  %v256 = vld [vmem:[%s5 + $0xf8] sm:$0xff]
  %v257 = vld [vmem:[%s5 + $0x100] sm:$0xff]
  %v258 = vld [vmem:[%s5 + $0x108] sm:$0xff]
  %v259 = vld [vmem:[%s5 + $0x110] sm:$0xff]
  %v260 = vld [vmem:[%s5 + $0x118] sm:$0xff]
  %v261 = vld [vmem:[%s5 + $0x120] sm:$0xff]
  %v262 = vld [vmem:[%s5 + $0x128] sm:$0xff]
  %v263 = vld [vmem:[%s5 + $0x130] sm:$0xff]
  %v264 = vld [vmem:[%s5 + $0x138] sm:$0xff]
  %v265 = vld [vmem:[%s5 + $0x140] sm:$0xff]
  %v266 = vld [vmem:[%s5 + $0x148] sm:$0xff]
  %v267 = vld [vmem:[%s5 + $0x150] sm:$0xff]
  %v268 = vld [vmem:[%s5 + $0x158] sm:$0xff]
  %v269 = vld [vmem:[%s5 + $0x160] sm:$0xff]
  %v270 = vld [vmem:[%s5 + $0x168] sm:$0xff]
  %v271 = vld [vmem:[%s5 + $0x170] sm:$0xff]
  %v272 = vld [vmem:[%s5 + $0x178] sm:$0xff]
  %v273 = vld [vmem:[%s5 + $0x180] sm:$0xff]
  %v274 = vld [vmem:[%s5 + $0x188] sm:$0xff]
  %v275 = vld [vmem:[%s5 + $0x190] sm:$0xff]
  %v276 = vld [vmem:[%s5 + $0x198] sm:$0xff]
  %v277 = vld [vmem:[%s5 + $0x1a0] sm:$0xff]
  %v278 = vld [vmem:[%s5 + $0x1a8] sm:$0xff]
  %v279 = vld [vmem:[%s5 + $0x1b0] sm:$0xff]
  %v280 = vld [vmem:[%s5 + $0x1b8] sm:$0xff]
  %v281 = vld [vmem:[%s5 + $0x1c0] sm:$0xff]
  %v282 = vld [vmem:[%s5 + $0x1c8] sm:$0xff]
  %v283 = vld [vmem:[%s5 + $0x1d0] sm:$0xff]
  %v284 = vld [vmem:[%s5 + $0x1d8] sm:$0xff]
  %v285 = vld [vmem:[%s5 + $0x1e0] sm:$0xff]
  %v286 = vld [vmem:[%s5 + $0x1e8] sm:$0xff]
  %v287 = vld [vmem:[%s5 + $0x1f0] sm:$0xff]
  %v288 = vld [vmem:[%s5 + $0x1f8] sm:$0xff]
  %v289 = vld [vmem:[%s5 + $0x200] sm:$0xff]
  %v290 = vld [vmem:[%s5 + $0x208] sm:$0xff]
  %v291 = vld [vmem:[%s5 + $0x210] sm:$0xff]
  %v292 = vld [vmem:[%s5 + $0x218] sm:$0xff]
  %v293 = vld [vmem:[%s5 + $0x220] sm:$0xff]
  %v294 = vld [vmem:[%s5 + $0x228] sm:$0xff]
  %v295 = vld [vmem:[%s5 + $0x230] sm:$0xff]
  %v296 = vld [vmem:[%s5 + $0x238] sm:$0xff]
  %v297 = vld [vmem:[%s5 + $0x240] sm:$0xff]
  %v298 = vld [vmem:[%s5 + $0x248] sm:$0xff]
  %v299 = vld [vmem:[%s5 + $0x250] sm:$0xff]
  %v300 = vld [vmem:[%s5 + $0x258] sm:$0xff]
  %v301 = vld [vmem:[%s5 + $0x260] sm:$0xff]
  %v302 = vld [vmem:[%s5 + $0x268] sm:$0xff]
  %v303 = vld [vmem:[%s5 + $0x270] sm:$0xff]
  %v304 = vld [vmem:[%s5 + $0x278] sm:$0xff]
  %v305 = vld [vmem:[%s6] sm:$0x1f]
  %v307 = vlaneseq
  %v308 = vshrl.u32 %v307, 7
  %v309 = vsub.s32 0, %v308
  %v310 = vrot.slane %v305, %v309
  %v311 = vlaneseq
  %v312 = vshrl.u32 %v311, 7
  %v313 = vsub.s32 1, %v312
  %v314 = vrot.slane %v305, %v313
  %v315 = vlaneseq
  %v316 = vshrl.u32 %v315, 7
  %v317 = vsub.s32 2, %v316
  %v318 = vrot.slane %v305, %v317
  %v319 = vlaneseq
  %v320 = vshrl.u32 %v319, 7
  %v321 = vsub.s32 3, %v320
  %v322 = vrot.slane %v305, %v321
  %v323 = vlaneseq
  %v324 = vshrl.u32 %v323, 7
  %v325 = vsub.s32 4, %v324
  %v326 = vrot.slane %v305, %v325
  %332 = vmatprep.subr.mxu0 %v301
  %333 = vmatpush1.msra.mxu0 %v300
  %334 = vmatprep.subr.mxu0 %v296
  %335 = vmatpush1.msra.mxu0 %v295
  %336 = vmatprep.subr.mxu0 %v291
  %337 = vmatpush1.msra.mxu0 %v290
  %338 = vmatprep.subr.mxu0 %v286
  %339 = vmatpush1.msra.mxu0 %v285
  %340 = vmatprep.subr.mxu0 %v281
  %341 = vmatpush1.msra.mxu0 %v280
  %342 = vmatprep.subr.mxu0 %v276
  %343 = vmatpush1.msra.mxu0 %v275
  %344 = vmatprep.subr.mxu0 %v271
  %345 = vmatpush1.msra.mxu0 %v270
  %346 = vmatprep.subr.mxu0 %v266
  %347 = vmatpush1.msra.mxu0 %v265
  %348 = vmatprep.subr.mxu0 %v261
  %349 = vmatpush1.msra.mxu0 %v260
  %350 = vmatprep.subr.mxu0 %v256
  %351 = vmatpush1.msra.mxu0 %v255
  %352 = vmatprep.subr.mxu0 %v251
  %353 = vmatpush1.msra.mxu0 %v250
  %354 = vmatprep.subr.mxu0 %v246
  %355 = vmatpush1.msra.mxu0 %v245
  %356 = vmatprep.subr.mxu0 %v241
  %357 = vmatpush1.msra.mxu0 %v240
  %358 = vmatprep.subr.mxu0 %v236
  %359 = vmatpush1.msra.mxu0 %v235
  %360 = vmatprep.subr.mxu0 %v231
  %361 = vmatpush1.msra.mxu0 %v230
  %362 = vmatprep.subr.mxu0 %v226
  %363 = vmatpush1.msra.mxu0 %v225
  %364 = vmatprep.subr.mxu0 0.0
  %365 = vmatpush2.msra.mxu0 0.0
  %366 = vmatprep.subr.mxu0 0.0
  %367 = vmatpush2.msra.mxu0 0.0
  %368 = vmatprep.subr.mxu0 0.0
  %369 = vmatpush2.msra.mxu0 0.0
  %370 = vmatprep.subr.mxu0 0.0
  %371 = vmatpush2.msra.mxu0 0.0
  %372 = vmatprep.subr.mxu0 0.0
  %373 = vmatpush2.msra.mxu0 0.0
  %374 = vmatprep.subr.mxu0 0.0
  %375 = vmatpush2.msra.mxu0 0.0
  %376 = vmatprep.subr.mxu0 0.0
  %377 = vmatpush2.msra.mxu0 0.0
  %378 = vmatprep.subr.mxu0 0.0
  %379 = vmatpush2.msra.mxu0 0.0
  %380 = vmatprep.subr.mxu0 0.0
  %381 = vmatpush2.msra.mxu0 0.0
  %382 = vmatprep.subr.mxu0 0.0
  %383 = vmatpush2.msra.mxu0 0.0
  %384 = vmatprep.subr.mxu0 0.0
  %385 = vmatpush2.msra.mxu0 0.0
  %386 = vmatprep.subr.mxu0 0.0
  %387 = vmatpush2.msra.mxu0 0.0
  %388 = vmatprep.subr.mxu0 0.0
  %389 = vmatpush2.msra.mxu0 0.0
  %390 = vmatprep.subr.mxu0 0.0
  %391 = vmatpush2.msra.mxu0 0.0
  %392 = vmatprep.subr.mxu0 0.0
  %393 = vmatpush2.msra.mxu0 0.0
  %394 = vmatprep.subr.mxu0 0.0
  %395 = vmatpush2.msra.mxu0 0.0
  %396 = vmatprep.mubr.f32.mxu0 0.0
  %397 = vmatmul.mubr.f32.gmra.mxu0 %v223
  %v398 = vpop.f32.mrf.mxu0
  %v399 = vadd.f32 %v310, %v398
  %v400 = vpop.f32.mrf.mxu0
  %v401 = vadd.f32 %v314, %v400
  %402 = vmatprep.mubr.f32.mxu0 0.0
  %403 = vmatmul.mubr.f32.gmra.mxu0 %v224
  %v404 = vpop.f32.mrf.mxu0
  %v405 = vadd.f32 %v310, %v404
  %v406 = vpop.f32.mrf.mxu0
  %v407 = vadd.f32 %v314, %v406
  %408 = vdwg.mxu0
  %409 = vmatprep.subr.mxu0 %v303
  %410 = vmatpush1.msra.mxu0 %v302
  %411 = vmatprep.subr.mxu0 %v298
  %412 = vmatpush1.msra.mxu0 %v297
  %413 = vmatprep.subr.mxu0 %v293
  %414 = vmatpush1.msra.mxu0 %v292
  %415 = vmatprep.subr.mxu0 %v288
  %416 = vmatpush1.msra.mxu0 %v287
  %417 = vmatprep.subr.mxu0 %v283
  %418 = vmatpush1.msra.mxu0 %v282
  %419 = vmatprep.subr.mxu0 %v278
  %420 = vmatpush1.msra.mxu0 %v277
  %421 = vmatprep.subr.mxu0 %v273
  %422 = vmatpush1.msra.mxu0 %v272
  %423 = vmatprep.subr.mxu0 %v268
  %424 = vmatpush1.msra.mxu0 %v267
  %425 = vmatprep.subr.mxu0 %v263
  %426 = vmatpush1.msra.mxu0 %v262
  %427 = vmatprep.subr.mxu0 %v258
  %428 = vmatpush1.msra.mxu0 %v257
  %429 = vmatprep.subr.mxu0 %v253
  %430 = vmatpush1.msra.mxu0 %v252
  %431 = vmatprep.subr.mxu0 %v248
  %432 = vmatpush1.msra.mxu0 %v247
  %433 = vmatprep.subr.mxu0 %v243
  %434 = vmatpush1.msra.mxu0 %v242
  %435 = vmatprep.subr.mxu0 %v238
  %436 = vmatpush1.msra.mxu0 %v237
  %437 = vmatprep.subr.mxu0 %v233
  %438 = vmatpush1.msra.mxu0 %v232
  %439 = vmatprep.subr.mxu0 %v228
  %440 = vmatpush1.msra.mxu0 %v227
  %441 = vmatprep.subr.mxu0 0.0
  %442 = vmatpush2.msra.mxu0 0.0
  %443 = vmatprep.subr.mxu0 0.0
  %444 = vmatpush2.msra.mxu0 0.0
  %445 = vmatprep.subr.mxu0 0.0
  %446 = vmatpush2.msra.mxu0 0.0
  %447 = vmatprep.subr.mxu0 0.0
  %448 = vmatpush2.msra.mxu0 0.0
  %449 = vmatprep.subr.mxu0 0.0
  %450 = vmatpush2.msra.mxu0 0.0
  %451 = vmatprep.subr.mxu0 0.0
  %452 = vmatpush2.msra.mxu0 0.0
  %453 = vmatprep.subr.mxu0 0.0
  %454 = vmatpush2.msra.mxu0 0.0
  %455 = vmatprep.subr.mxu0 0.0
  %456 = vmatpush2.msra.mxu0 0.0
  %457 = vmatprep.subr.mxu0 0.0
  %458 = vmatpush2.msra.mxu0 0.0
  %459 = vmatprep.subr.mxu0 0.0
  %460 = vmatpush2.msra.mxu0 0.0
  %461 = vmatprep.subr.mxu0 0.0
  %462 = vmatpush2.msra.mxu0 0.0
  %463 = vmatprep.subr.mxu0 0.0
  %464 = vmatpush2.msra.mxu0 0.0
  %465 = vmatprep.subr.mxu0 0.0
  %466 = vmatpush2.msra.mxu0 0.0
  %467 = vmatprep.subr.mxu0 0.0
  %468 = vmatpush2.msra.mxu0 0.0
  %469 = vmatprep.subr.mxu0 0.0
  %470 = vmatpush2.msra.mxu0 0.0
  %471 = vmatprep.subr.mxu0 0.0
  %472 = vmatpush2.msra.mxu0 0.0
  %473 = vmatprep.mubr.f32.mxu0 0.0
  %474 = vmatmul.mubr.f32.gmra.mxu0 %v223
  %v475 = vpop.f32.mrf.mxu0
  %v476 = vadd.f32 %v318, %v475
  %v477 = vpop.f32.mrf.mxu0
  %v478 = vadd.f32 %v322, %v477
  %479 = vmatprep.mubr.f32.mxu0 0.0
  %480 = vmatmul.mubr.f32.gmra.mxu0 %v224
  %v481 = vpop.f32.mrf.mxu0
  %v482 = vadd.f32 %v318, %v481
  %v483 = vpop.f32.mrf.mxu0
  %v484 = vadd.f32 %v322, %v483
  %485 = vdwg.mxu0
  %486 = vmatprep.subr.mxu0 0.0
  %487 = vmatpush1.msra.mxu0 %v304
  %488 = vmatprep.subr.mxu0 0.0
  %489 = vmatpush1.msra.mxu0 %v299
  %490 = vmatprep.subr.mxu0 0.0
  %491 = vmatpush1.msra.mxu0 %v294
  %492 = vmatprep.subr.mxu0 0.0
  %493 = vmatpush1.msra.mxu0 %v289
  %494 = vmatprep.subr.mxu0 0.0
  %495 = vmatpush1.msra.mxu0 %v284
  %496 = vmatprep.subr.mxu0 0.0
  %497 = vmatpush1.msra.mxu0 %v279
  %498 = vmatprep.subr.mxu0 0.0
  %499 = vmatpush1.msra.mxu0 %v274
  %500 = vmatprep.subr.mxu0 0.0
  %501 = vmatpush1.msra.mxu0 %v269
  %502 = vmatprep.subr.mxu0 0.0
  %503 = vmatpush1.msra.mxu0 %v264
  %504 = vmatprep.subr.mxu0 0.0
  %505 = vmatpush1.msra.mxu0 %v259
  %506 = vmatprep.subr.mxu0 0.0
  %507 = vmatpush1.msra.mxu0 %v254
  %508 = vmatprep.subr.mxu0 0.0
  %509 = vmatpush1.msra.mxu0 %v249
  %510 = vmatprep.subr.mxu0 0.0
  %511 = vmatpush1.msra.mxu0 %v244
  %512 = vmatprep.subr.mxu0 0.0
  %513 = vmatpush1.msra.mxu0 %v239
  %514 = vmatprep.subr.mxu0 0.0
  %515 = vmatpush1.msra.mxu0 %v234
  %516 = vmatprep.subr.mxu0 0.0
  %517 = vmatpush1.msra.mxu0 %v229
  %518 = vmatprep.subr.mxu0 0.0
  %519 = vmatpush2.msra.mxu0 0.0
  %520 = vmatprep.subr.mxu0 0.0
  %521 = vmatpush2.msra.mxu0 0.0
  %522 = vmatprep.subr.mxu0 0.0
  %523 = vmatpush2.msra.mxu0 0.0
  %524 = vmatprep.subr.mxu0 0.0
  %525 = vmatpush2.msra.mxu0 0.0
  %526 = vmatprep.subr.mxu0 0.0
  %527 = vmatpush2.msra.mxu0 0.0
  %528 = vmatprep.subr.mxu0 0.0
  %529 = vmatpush2.msra.mxu0 0.0
  %530 = vmatprep.subr.mxu0 0.0
  %531 = vmatpush2.msra.mxu0 0.0
  %532 = vmatprep.subr.mxu0 0.0
  %533 = vmatpush2.msra.mxu0 0.0
  %534 = vmatprep.subr.mxu0 0.0
  %535 = vmatpush2.msra.mxu0 0.0
  %536 = vmatprep.subr.mxu0 0.0
  %537 = vmatpush2.msra.mxu0 0.0
  %538 = vmatprep.subr.mxu0 0.0
  %539 = vmatpush2.msra.mxu0 0.0
  %540 = vmatprep.subr.mxu0 0.0
  %541 = vmatpush2.msra.mxu0 0.0
  %542 = vmatprep.subr.mxu0 0.0
  %543 = vmatpush2.msra.mxu0 0.0
  %544 = vmatprep.subr.mxu0 0.0
  %545 = vmatpush2.msra.mxu0 0.0
  %546 = vmatprep.subr.mxu0 0.0
  %547 = vmatpush2.msra.mxu0 0.0
  %548 = vmatprep.subr.mxu0 0.0
  %549 = vmatpush2.msra.mxu0 0.0
  %550 = vmatprep.mubr.f32.mxu0 0.0
  %551 = vmatmul.mubr.f32.gmra.mxu0 %v223
  %v552 = vpop.f32.mrf.mxu0
  %v553 = vadd.f32 %v326, %v552
  %v554 = vpop.f32.mrf.mxu0
  %555 = vmatprep.mubr.f32.mxu0 0.0
  %556 = vmatmul.mubr.f32.gmra.mxu0 %v224
  %v557 = vpop.f32.mrf.mxu0
  %v558 = vadd.f32 %v326, %v557
  %v559 = vpop.f32.mrf.mxu0
  %560 = vdwg.mxu0
  %561 = vst [vmem:[%s7] sm:$0xff] %v399
  %562 = vst [vmem:[%s7 + $0x8] sm:$0xff] %v401
  %563 = vst [vmem:[%s7 + $0x10] sm:$0xff] %v476
  %564 = vst [vmem:[%s7 + $0x18] sm:$0xff] %v478
  %565 = vst [vmem:[%s7 + $0x20] sm:$0xff] %v553
  %566 = vst [vmem:[%s7 + $0x28] sm:$0xff] %v405
  %567 = vst [vmem:[%s7 + $0x30] sm:$0xff] %v407
  %568 = vst [vmem:[%s7 + $0x38] sm:$0xff] %v482
  %569 = vst [vmem:[%s7 + $0x40] sm:$0xff] %v484
  %570 = vst [vmem:[%s7 + $0x48] sm:$0xff] %v558
  // Predicated region
  $region30: #{forecast_cch_forward.1} parent=0 // pred_check
    _
  $region31: #{forecast_cch_forward.1} parent=0 // pred_check_branch
    %572 = sbr.rel (0) target = $region33
  $region32: #{forecast_cch_forward.1} parent=0 // pred_region
    _
  $region33: #{forecast_cch_forward.1} parent=0 // pred_fallthru
    _
  // Predicated region
  $region34: #{forecast_cch_forward.1} parent=0 // pred_check
    _
  $region35: #{forecast_cch_forward.1} parent=0 // pred_check_branch
    %574 = sbr.rel (0) target = $region37
  $region36: #{forecast_cch_forward.1} parent=0 // pred_region
    _
  $region37: #{forecast_cch_forward.1} parent=0 // pred_fallthru
    _

</llo_original>
